<compile_context>
chip_gen: v6e
topology: v6e:2x2x1
jax: 0.10.0
libtpu: 0.0.40
codegen_flags: <defaults>
</compile_context>

<pallas_src>
import functools

import jax
import jax.numpy as jnp
import numpy as np
from jax import lax
from jax.experimental import pallas as pl
from jax.experimental.pallas import tpu as pltpu

LANE = 128  # lane width used for all packed blocks / activations / output


def _round_up(x, m):
    return ((x + m - 1) // m) * m


def mlp_attn_kernel(B, D, layers, offs, idx_ref, emb_ref, w_ref, out_ref):
    """Fused forward (single gridless step; all operands lane-dense).

    idx_ref : VMEM i32[2B, 1]   combined indices (rows 0..B-1 user,
                                B..2B-1 item + num_users)
    emb_ref : VMEM f32[K, 128]  user rows then item rows, zero-padded to
                                K = round_up(U+I, 128) rows / 128 lanes
    w_ref   : VMEM f32[R, 128]  packed weights+biases (see pack_weights);
                                every matrix block is 128 rows, lane-dense
    out_ref : VMEM f32[B, 128]  col 0 = sigmoid(logit); cols 1..127 = 0.5
                                (sigmoid of the zero-padded affine lanes)
    """
    n_fc = len(layers) - 1
    K = emb_ref.shape[0]

    def wmat(name):            # [128, 128] lane-dense, sublane-aligned slice
        o = offs[name]
        return w_ref[o:o + LANE, :]

    def wbias(name):           # [1, 128] row (block is 8 rows, row 0 valid)
        o = offs[name]
        return w_ref[o:o + 1, :]

    # ---- one-hot MXU gather (no scratch, no per-row dynamic stores) ----
    idx = idx_ref[...]                                          # [2B, 1] i32
    col = lax.broadcasted_iota(jnp.int32, (2 * B, K), 1)        # [2B, K]
    one_hot = (idx == col).astype(jnp.float32)                  # [2B, K]
    x = jnp.dot(one_hot, emb_ref[...],
                preferred_element_type=jnp.float32)             # [2B, 128]

    u = x[0:B, :]                                               # user rows
    it = x[B:2 * B, :]                                          # item rows

    # ---- Q/K/V: three lane-dense MXU matmuls (no sub-tile column slices) --
    q = jnp.dot(u, wmat('w_q'), preferred_element_type=jnp.float32) + wbias('b_q')
    k = jnp.dot(it, wmat('w_k'), preferred_element_type=jnp.float32) + wbias('b_k')
    v = jnp.dot(it, wmat('w_v'), preferred_element_type=jnp.float32) + wbias('b_v')

    # ---- scaled dot-product attention (contract lane dims; no k.T) ----
    scores = lax.dot_general(q, k, (((1,), (1,)), ((), ())),
                             preferred_element_type=jnp.float32)  # [B, B]
    scores = scores * (float(D) ** -0.5)                          # static scale
    m = jnp.max(scores, axis=-1, keepdims=True)
    e = jnp.exp(scores - m)
    s = jnp.sum(e, axis=-1, keepdims=True)
    inv = pl.reciprocal(s, approx=True)
    inv = inv * (2.0 - s * inv)            # one Newton step -> f32 precision
    attn = e * inv
    attended = jnp.dot(attn, v, preferred_element_type=jnp.float32)  # [B, 128]

    # ---- fc0 over concat([user, attended]) as a split (lane-dense) matmul --
    h = (jnp.dot(u, wmat('w_fc0a'), preferred_element_type=jnp.float32)
         + jnp.dot(attended, wmat('w_fc0b'), preferred_element_type=jnp.float32)
         + wbias('b_fc0'))
    h = jnp.maximum(h, 0.0)

    # ---- remaining fc layers (activations stay [B, 128]) ----
    for i in range(1, n_fc):
        h = jnp.maximum(
            jnp.dot(h, wmat(f'w_fc{i}'), preferred_element_type=jnp.float32)
            + wbias(f'b_fc{i}'), 0.0)

    # ---- affine output (zero-padded to 128 lanes -> unmasked dense store) --
    logits = (jnp.dot(h, wmat('w_aff'), preferred_element_type=jnp.float32)
              + wbias('b_aff'))
    out_ref[...] = jax.nn.sigmoid(logits)                        # [B, 128]


def pack_weights(params, layers):
    """Pack every Linear weight/bias into one [R, 128] f32 buffer (one DMA).

    Every weight matrix becomes a zero-padded [128, 128] lane-dense block;
    every bias becomes an 8-row block (row 0 valid).  All row offsets are
    multiples of 8 (sublane-tile aligned).  fc0's weight is split into two
    blocks (rows acting on the user embedding / on the attended output) so
    the kernel never needs to materialize the concat.
    Returns (packed jnp.ndarray, dict of static row offsets).
    """
    n_fc = len(layers) - 1
    D = np.asarray(params['wq']).shape[0]
    assert all(l <= LANE for l in layers) and D <= LANE

    blocks, offs, cur = [], {}, 0

    def add(name, mat, rows):
        nonlocal cur
        mat = np.asarray(mat, np.float32)
        r, c = mat.shape
        assert r <= rows and c <= LANE
        buf = np.zeros((rows, LANE), np.float32)
        buf[:r, :c] = mat
        blocks.append(buf)
        offs[name] = cur
        cur += rows

    add('w_q', params['wq'], LANE)
    add('w_k', params['wk'], LANE)
    add('w_v', params['wv'], LANE)
    add('b_q', params['bq'], 8)
    add('b_k', params['bk'], 8)
    add('b_v', params['bv'], 8)

    fc0_w = np.asarray(params['fc_w'][0], np.float32)            # [2D, H0]
    add('w_fc0a', fc0_w[:D, :], LANE)
    add('w_fc0b', fc0_w[D:, :], LANE)
    add('b_fc0', params['fc_b'][0], 8)
    for i in range(1, n_fc):
        add(f'w_fc{i}', params['fc_w'][i], LANE)
        add(f'b_fc{i}', params['fc_b'][i], 8)

    add('w_aff', params['w_aff'], LANE)
    add('b_aff', params['b_aff'], 8)

    packed = jnp.asarray(np.concatenate(blocks, axis=0))
    return packed, offs


def pack_embeddings(params, num_users, num_items):
    """User table rows then item table rows, zero-padded to a lane-dense
    [round_up(U+I, 128), 128] f32 block (VMEM-resident for the toy size)."""
    emb = np.concatenate([np.asarray(params['emb_user'], np.float32),
                          np.asarray(params['emb_item'], np.float32)], axis=0)
    rows, d = emb.shape
    assert d <= LANE
    k = _round_up(max(rows, 1), LANE)
    buf = np.zeros((k, LANE), np.float32)
    buf[:rows, :d] = emb
    return jnp.asarray(buf)


def mlp_forward(user_indices, item_indices, emb_pack, w_pack, offs,
                latent_dim, layers, num_users, num_items):
    """Single fused pallas_call: index vector + 2 VMEM buffers in, [B,128] out."""
    B = int(user_indices.shape[0])
    D = latent_dim
    assert layers[0] == 2 * D, "layers[0] must equal 2 * latent_dim"
    assert B % 8 == 0, "batch must be a multiple of 8 (sublane tile)"

    # Clamp indices (matches nn.Embedding's valid-range contract; the one-hot
    # gather would otherwise just yield a zero row, never an OOB read).
    u_idx = jnp.clip(user_indices.astype(jnp.int32), 0, num_users - 1)
    i_idx = jnp.clip(item_indices.astype(jnp.int32), 0, num_items - 1) + num_users
    idx = jnp.concatenate([u_idx, i_idx], axis=0).reshape(2 * B, 1)

    kernel = functools.partial(mlp_attn_kernel, B, D, tuple(layers), offs)
    vmem = pl.BlockSpec(memory_space=pltpu.MemorySpace.VMEM)

    n_fc = len(layers) - 1
    flops = 2 * (2 * B * emb_pack.shape[0] * LANE        # one-hot gather
                 + 3 * B * LANE * LANE                   # q / k / v
                 + B * B * LANE                          # scores
                 + B * B * LANE                          # attn @ v
                 + 2 * B * LANE * LANE                   # fc0 split matmul
                 + (n_fc - 1) * B * LANE * LANE          # remaining fc
                 + B * LANE * LANE)                      # affine
    bytes_accessed = 4 * (idx.size + emb_pack.size + w_pack.size + B * LANE)
    cost = pl.CostEstimate(flops=flops,
                           transcendentals=B * B + B * LANE,
                           bytes_accessed=bytes_accessed)

    out = pl.pallas_call(
        kernel,
        out_shape=jax.ShapeDtypeStruct((B, LANE), jnp.float32),  # lane-dense
        in_specs=[vmem, vmem, vmem],
        out_specs=vmem,
        cost_estimate=cost,
    )(idx, emb_pack, w_pack)
    return out[:, :1]                                            # [B, 1]


def make_params(key, num_users, num_items, latent_dim, layers):
    """Synthetic init mirroring the PyTorch module (N(0, 0.01) weights).
    Linear weights stored pre-transposed as [in, out]; biases as [1, out]."""
    keys = iter(jax.random.split(key, 64))
    std = 0.01

    def lin(in_f, out_f):
        w = std * jax.random.normal(next(keys), (in_f, out_f), jnp.float32)
        bound = 1.0 / np.sqrt(in_f)
        b = jax.random.uniform(next(keys), (1, out_f), jnp.float32,
                               minval=-bound, maxval=bound)
        return w, b

    params = {}
    params['emb_user'] = std * jax.random.normal(
        next(keys), (num_users, latent_dim), jnp.float32)
    params['emb_item'] = std * jax.random.normal(
        next(keys), (num_items, latent_dim), jnp.float32)

    params['wq'], params['bq'] = lin(latent_dim, latent_dim)
    params['wk'], params['bk'] = lin(latent_dim, latent_dim)
    params['wv'], params['bv'] = lin(latent_dim, latent_dim)

    fc_w, fc_b = [], []
    for in_size, out_size in zip(layers[:-1], layers[1:]):
        w, b = lin(in_size, out_size)
        fc_w.append(w)
        fc_b.append(b)
    params['fc_w'], params['fc_b'] = fc_w, fc_b

    params['w_aff'], params['b_aff'] = lin(layers[-1], 1)
    return params


def reference_forward(user_indices, item_indices, params, layers):
    """Pure-JAX reference of the PyTorch forward (for correctness check)."""
    u = jnp.take(params['emb_user'], user_indices, axis=0)
    it = jnp.take(params['emb_item'], item_indices, axis=0)
    D = u.shape[-1]
    q = u @ params['wq'] + params['bq']
    k = it @ params['wk'] + params['bk']
    v = it @ params['wv'] + params['bv']
    scores = (q @ k.T) / jnp.sqrt(jnp.float32(D))
    attn = jax.nn.softmax(scores, axis=-1)
    attended = attn @ v
    vec = jnp.concatenate([u, attended], axis=-1)
    for w, b in zip(params['fc_w'], params['fc_b']):
        vec = jnp.maximum(vec @ w + b, 0.0)
    logits = vec @ params['w_aff'] + params['b_aff']
    return jax.nn.sigmoid(logits)


if __name__ == "__main__":
    # Small NCF-style config: layers[0] must equal 2 * latent_dim.
    config = dict(num_users=32, num_items=48, latent_dim=16,
                  layers=[32, 32, 16], weight_init_gaussian=True)
    B = 8

    key = jax.random.PRNGKey(0)
    kp, ku, ki = jax.random.split(key, 3)
    params = make_params(kp, config['num_users'], config['num_items'],
                         config['latent_dim'], config['layers'])
    user_indices = jax.random.randint(ku, (B,), 0, config['num_users'])
    item_indices = jax.random.randint(ki, (B,), 0, config['num_items'])

    # One-time host-side packing: weights -> single lane-dense buffer,
    # embedding tables -> single lane-dense buffer.
    w_pack, offs = pack_weights(params, config['layers'])
    emb_pack = pack_embeddings(params, config['num_users'], config['num_items'])

    rating = mlp_forward(user_indices, item_indices, emb_pack, w_pack, offs,
                         config['latent_dim'], config['layers'],
                         config['num_users'], config['num_items'])
    rating = jax.block_until_ready(rating)

    ref = reference_forward(user_indices, item_indices, params, config['layers'])
    np.testing.assert_allclose(np.asarray(rating), np.asarray(ref),
                               rtol=1e-5, atol=1e-5)
    assert rating.shape == (B, 1)
    print("KERNEL_OK")
</pallas_src>

<mosaic_0001>
module attributes {stable_mosaic.version = 11 : i64} {
  func.func @mlp_attn_kernel(%arg0: memref<16x1xi32, #tpu.memory_space<vmem>>, %arg1: memref<128x128xf32, #tpu.memory_space<vmem>>, %arg2: memref<944x128xf32, #tpu.memory_space<vmem>>, %arg3: memref<8x128xf32, #tpu.memory_space<vmem>>) attributes {dimension_semantics = [], scalar_prefetch = 0 : i64, scratch_operands = 0 : i64, tpu.core_type = #tpu.core_type<tc>} {
    %c0 = arith.constant 0 : index
    %c0_0 = arith.constant 0 : index
    %0 = vector.load %arg0[%c0, %c0_0] : memref<16x1xi32, #tpu.memory_space<vmem>>, vector<16x1xi32>
    %1 = tpu.iota {dimensions = array<i32: 1>} : vector<16x128xi32>
    %2 = vector.broadcast %0 : vector<16x1xi32> to vector<16x128xi32>
    %3 = arith.cmpi eq, %2, %1 : vector<16x128xi32>
    %4 = arith.extui %3 : vector<16x128xi1> to vector<16x128xi32>
    %5 = arith.sitofp %4 : vector<16x128xi32> to vector<16x128xf32>
    %c0_1 = arith.constant 0 : index
    %c0_2 = arith.constant 0 : index
    %6 = vector.load %arg1[%c0_1, %c0_2] : memref<128x128xf32, #tpu.memory_space<vmem>>, vector<128x128xf32>
    %cst = arith.constant dense<0.000000e+00> : vector<16x128xf32>
    %7 = tpu.matmul %5, %6, %cst {dimension_numbers = #tpu.dot_dimension_numbers<[1], [0], [0], [1], [0, 0, 1, 1], [], []>} : vector<16x128xf32>, vector<128x128xf32>, vector<16x128xf32> -> vector<16x128xf32>
    %8 = vector.extract_strided_slice %7 {offsets = [0, 0], sizes = [8, 128], strides = [1, 1]} : vector<16x128xf32> to vector<8x128xf32>
    %9 = vector.extract_strided_slice %7 {offsets = [8, 0], sizes = [8, 128], strides = [1, 1]} : vector<16x128xf32> to vector<8x128xf32>
    %c0_3 = arith.constant 0 : index
    %c0_4 = arith.constant 0 : index
    %10 = vector.load %arg2[%c0_3, %c0_4] : memref<944x128xf32, #tpu.memory_space<vmem>>, vector<128x128xf32>
    %cst_5 = arith.constant dense<0.000000e+00> : vector<8x128xf32>
    %11 = tpu.matmul %8, %10, %cst_5 {dimension_numbers = #tpu.dot_dimension_numbers<[1], [0], [0], [1], [0, 0, 1, 1], [], []>} : vector<8x128xf32>, vector<128x128xf32>, vector<8x128xf32> -> vector<8x128xf32>
    %c384 = arith.constant 384 : index
    %c0_6 = arith.constant 0 : index
    %12 = vector.load %arg2[%c384, %c0_6] : memref<944x128xf32, #tpu.memory_space<vmem>>, vector<1x128xf32>
    %13 = vector.broadcast %12 : vector<1x128xf32> to vector<8x128xf32>
    %14 = arith.addf %11, %13 : vector<8x128xf32>
    %c128 = arith.constant 128 : index
    %c0_7 = arith.constant 0 : index
    %15 = vector.load %arg2[%c128, %c0_7] : memref<944x128xf32, #tpu.memory_space<vmem>>, vector<128x128xf32>
    %cst_8 = arith.constant dense<0.000000e+00> : vector<8x128xf32>
    %16 = tpu.matmul %9, %15, %cst_8 {dimension_numbers = #tpu.dot_dimension_numbers<[1], [0], [0], [1], [0, 0, 1, 1], [], []>} : vector<8x128xf32>, vector<128x128xf32>, vector<8x128xf32> -> vector<8x128xf32>
    %c392 = arith.constant 392 : index
    %c0_9 = arith.constant 0 : index
    %17 = vector.load %arg2[%c392, %c0_9] : memref<944x128xf32, #tpu.memory_space<vmem>>, vector<1x128xf32>
    %18 = vector.broadcast %17 : vector<1x128xf32> to vector<8x128xf32>
    %19 = arith.addf %16, %18 : vector<8x128xf32>
    %c256 = arith.constant 256 : index
    %c0_10 = arith.constant 0 : index
    %20 = vector.load %arg2[%c256, %c0_10] : memref<944x128xf32, #tpu.memory_space<vmem>>, vector<128x128xf32>
    %cst_11 = arith.constant dense<0.000000e+00> : vector<8x128xf32>
    %21 = tpu.matmul %9, %20, %cst_11 {dimension_numbers = #tpu.dot_dimension_numbers<[1], [0], [0], [1], [0, 0, 1, 1], [], []>} : vector<8x128xf32>, vector<128x128xf32>, vector<8x128xf32> -> vector<8x128xf32>
    %c400 = arith.constant 400 : index
    %c0_12 = arith.constant 0 : index
    %22 = vector.load %arg2[%c400, %c0_12] : memref<944x128xf32, #tpu.memory_space<vmem>>, vector<1x128xf32>
    %23 = vector.broadcast %22 : vector<1x128xf32> to vector<8x128xf32>
    %24 = arith.addf %21, %23 : vector<8x128xf32>
    %cst_13 = arith.constant dense<0.000000e+00> : vector<8x8xf32>
    %25 = tpu.matmul %14, %19, %cst_13 {dimension_numbers = #tpu.dot_dimension_numbers<[1], [1], [0], [0], [0, 0, 1, 0], [], []>} : vector<8x128xf32>, vector<8x128xf32>, vector<8x8xf32> -> vector<8x8xf32>
    %cst_14 = arith.constant 2.500000e-01 : f32
    %26 = vector.broadcast %cst_14 : f32 to vector<8x8xf32>
    %27 = arith.mulf %25, %26 : vector<8x8xf32>
    %cst_15 = arith.constant dense<0xFF800000> : vector<8xf32>
    %28 = vector.multi_reduction <maximumf>, %27, %cst_15 [1] : vector<8x8xf32> to vector<8xf32>
    %29 = vector.shape_cast %28 : vector<8xf32> to vector<8x1xf32>
    %30 = vector.broadcast %29 : vector<8x1xf32> to vector<8x8xf32>
    %31 = arith.subf %27, %30 : vector<8x8xf32>
    %32 = math.exp %31 : vector<8x8xf32>
    %cst_16 = arith.constant dense<0.000000e+00> : vector<8xf32>
    %33 = vector.multi_reduction <add>, %32, %cst_16 [1] : vector<8x8xf32> to vector<8xf32>
    %34 = vector.shape_cast %33 : vector<8xf32> to vector<8x1xf32>
    %35 = tpu.reciprocal %34 {approx = true} : vector<8x1xf32> -> vector<8x1xf32>
    %36 = arith.mulf %34, %35 : vector<8x1xf32>
    %cst_17 = arith.constant 2.000000e+00 : f32
    %37 = vector.broadcast %cst_17 : f32 to vector<8x1xf32>
    %38 = arith.subf %37, %36 : vector<8x1xf32>
    %39 = arith.mulf %35, %38 : vector<8x1xf32>
    %40 = vector.broadcast %39 : vector<8x1xf32> to vector<8x8xf32>
    %41 = arith.mulf %32, %40 : vector<8x8xf32>
    %cst_18 = arith.constant dense<0.000000e+00> : vector<8x128xf32>
    %42 = tpu.matmul %41, %24, %cst_18 {dimension_numbers = #tpu.dot_dimension_numbers<[1], [0], [0], [1], [0, 0, 1, 1], [], []>} : vector<8x8xf32>, vector<8x128xf32>, vector<8x128xf32> -> vector<8x128xf32>
    %c408 = arith.constant 408 : index
    %c0_19 = arith.constant 0 : index
    %43 = vector.load %arg2[%c408, %c0_19] : memref<944x128xf32, #tpu.memory_space<vmem>>, vector<128x128xf32>
    %cst_20 = arith.constant dense<0.000000e+00> : vector<8x128xf32>
    %44 = tpu.matmul %8, %43, %cst_20 {dimension_numbers = #tpu.dot_dimension_numbers<[1], [0], [0], [1], [0, 0, 1, 1], [], []>} : vector<8x128xf32>, vector<128x128xf32>, vector<8x128xf32> -> vector<8x128xf32>
    %c536 = arith.constant 536 : index
    %c0_21 = arith.constant 0 : index
    %45 = vector.load %arg2[%c536, %c0_21] : memref<944x128xf32, #tpu.memory_space<vmem>>, vector<128x128xf32>
    %cst_22 = arith.constant dense<0.000000e+00> : vector<8x128xf32>
    %46 = tpu.matmul %42, %45, %cst_22 {dimension_numbers = #tpu.dot_dimension_numbers<[1], [0], [0], [1], [0, 0, 1, 1], [], []>} : vector<8x128xf32>, vector<128x128xf32>, vector<8x128xf32> -> vector<8x128xf32>
    %47 = arith.addf %44, %46 : vector<8x128xf32>
    %c664 = arith.constant 664 : index
    %c0_23 = arith.constant 0 : index
    %48 = vector.load %arg2[%c664, %c0_23] : memref<944x128xf32, #tpu.memory_space<vmem>>, vector<1x128xf32>
    %49 = vector.broadcast %48 : vector<1x128xf32> to vector<8x128xf32>
    %50 = arith.addf %47, %49 : vector<8x128xf32>
    %cst_24 = arith.constant 0.000000e+00 : f32
    %51 = vector.broadcast %cst_24 : f32 to vector<8x128xf32>
    %52 = arith.maximumf %50, %51 : vector<8x128xf32>
    %c672 = arith.constant 672 : index
    %c0_25 = arith.constant 0 : index
    %53 = vector.load %arg2[%c672, %c0_25] : memref<944x128xf32, #tpu.memory_space<vmem>>, vector<128x128xf32>
    %cst_26 = arith.constant dense<0.000000e+00> : vector<8x128xf32>
    %54 = tpu.matmul %52, %53, %cst_26 {dimension_numbers = #tpu.dot_dimension_numbers<[1], [0], [0], [1], [0, 0, 1, 1], [], []>} : vector<8x128xf32>, vector<128x128xf32>, vector<8x128xf32> -> vector<8x128xf32>
    %c800 = arith.constant 800 : index
    %c0_27 = arith.constant 0 : index
    %55 = vector.load %arg2[%c800, %c0_27] : memref<944x128xf32, #tpu.memory_space<vmem>>, vector<1x128xf32>
    %56 = vector.broadcast %55 : vector<1x128xf32> to vector<8x128xf32>
    %57 = arith.addf %54, %56 : vector<8x128xf32>
    %cst_28 = arith.constant 0.000000e+00 : f32
    %58 = vector.broadcast %cst_28 : f32 to vector<8x128xf32>
    %59 = arith.maximumf %57, %58 : vector<8x128xf32>
    %c808 = arith.constant 808 : index
    %c0_29 = arith.constant 0 : index
    %60 = vector.load %arg2[%c808, %c0_29] : memref<944x128xf32, #tpu.memory_space<vmem>>, vector<128x128xf32>
    %cst_30 = arith.constant dense<0.000000e+00> : vector<8x128xf32>
    %61 = tpu.matmul %59, %60, %cst_30 {dimension_numbers = #tpu.dot_dimension_numbers<[1], [0], [0], [1], [0, 0, 1, 1], [], []>} : vector<8x128xf32>, vector<128x128xf32>, vector<8x128xf32> -> vector<8x128xf32>
    %c936 = arith.constant 936 : index
    %c0_31 = arith.constant 0 : index
    %62 = vector.load %arg2[%c936, %c0_31] : memref<944x128xf32, #tpu.memory_space<vmem>>, vector<1x128xf32>
    %63 = vector.broadcast %62 : vector<1x128xf32> to vector<8x128xf32>
    %64 = arith.addf %61, %63 : vector<8x128xf32>
    %65 = arith.negf %64 : vector<8x128xf32>
    %66 = math.exp %65 : vector<8x128xf32>
    %cst_32 = arith.constant 1.000000e+00 : f32
    %67 = vector.broadcast %cst_32 : f32 to vector<8x128xf32>
    %68 = arith.addf %67, %66 : vector<8x128xf32>
    %69 = arith.divf %67, %68 : vector<8x128xf32>
    %c0_33 = arith.constant 0 : index
    %c0_34 = arith.constant 0 : index
    %70 = vector.load %arg3[%c0_33, %c0_34] : memref<8x128xf32, #tpu.memory_space<vmem>>, vector<8x128xf32>
    tpu.vector_store %arg3[%c0_33, %c0_34], %69 {strides = array<i32>} : memref<8x128xf32, #tpu.memory_space<vmem>>, vector<8x128xf32>,
    return
  }
}

</mosaic_0001>

<llo_original>
// kernel: tpu_custom_call.1
$region0: #{tpu_custom_call.1}
  #allocation0 [shape = 'u32[]', space=smem, size = 0x4, offset = 0x4, fixed_abs, tag = 'smem constant byte address 0x4 - core index']
  #allocation1 [shape = 'u32[144,128]{1,0:T(1,128)}', space=vmem, size = 0x12000, scoped, tag = 'internal scratch']
  %s0 = inlined_call_operand.vmem [shape: s32[16,1], index: 0, kind: input, shape index: {}]
  %s1 = inlined_call_operand.hbm [shape: f32[128,128], index: 1, kind: input, shape index: {}]
  %s2 = inlined_call_operand.hbm [shape: f32[944,128], index: 2, kind: input, shape index: {}]
  %s3 = inlined_call_operand.hbm [shape: f32[8,128], index: 3, kind: output, shape index: {}]
  %s4 = sld [smem:[#allocation0]]
  $region30: #{tpu_custom_call.1} parent=0
    _
  %s6 = ssub.s32 1, %s4
  %s7 = scalar_select 0, %s6, %s4
  $region1: #{tpu_custom_call.1} parent=0
    #allocation2 [shape = 'u8[65536]{0}', space=vmem, size = 0x10000, scoped, tag = 'input window, operand 1, single buffered']
    #allocation3 [shape = 's32[1]{0}', space=sflag, size = 0x4, scoped, tag = 'scoped memory for tpu_custom_call.1']
    #allocation4 [shape = 's32[1]{0}', space=sflag, size = 0x4, scoped, tag = 'scoped memory for tpu_custom_call.1']
    #allocation5 [shape = 'u8[483328]{0}', space=vmem, size = 0x76000, scoped, tag = 'input window, operand 2, single buffered']
    #allocation6 [shape = 's32[1]{0}', space=sflag, size = 0x4, scoped, tag = 'scoped memory for tpu_custom_call.1']
    #allocation7 [shape = 'u8[4096]{0}', space=vmem, size = 0x1000, scoped, tag = 'output window, operand 0, single buffered']
    %8 = vsyncpa [#allocation3], 0
    %9 = vsyncpa [#allocation6], 0
    %10 = vsyncpa [#allocation4], 0
    // Predicated region
    $region2: #{tpu_custom_call.1} parent=1 // pred_check
      _
    $region3: #{tpu_custom_call.1} parent=1 // pred_check_branch
      %12 = sbr.rel (0) target = $region5
    $region4: #{tpu_custom_call.1} parent=1 // pred_region
      _
    $region5: #{tpu_custom_call.1} parent=1 // pred_fallthru
      _
    // Predicated region
    $region6: #{tpu_custom_call.1} parent=1 // pred_check
      _
    $region7: #{tpu_custom_call.1} parent=1 // pred_check_branch
      %14 = sbr.rel (0) target = $region9
    $region8: #{tpu_custom_call.1} parent=1 // pred_region
      %s16 = ssub.s32 2048, 2048
      %17 = vsyncadd [#allocation3], %s16
      %s18 = sshll.u32 [#allocation2], 4
      %s19 = int_to_ptr.vmem [resolvable:$true] %s18
      %24 = dma.hbm_to_vmem [thread:$0]  %s1, 2048, %s19, [#allocation3], 128, 128, 8
    $region9: #{tpu_custom_call.1} parent=1 // pred_fallthru
      _
    // Predicated region
    $region10: #{tpu_custom_call.1} parent=1 // pred_check
      _
    $region11: #{tpu_custom_call.1} parent=1 // pred_check_branch
      %26 = sbr.rel (0) target = $region13
    $region12: #{tpu_custom_call.1} parent=1 // pred_region
      %s28 = ssub.s32 15104, 15104
      %29 = vsyncadd [#allocation6], %s28
      %s30 = sshll.u32 [#allocation5], 4
      %s31 = int_to_ptr.vmem [resolvable:$true] %s30
      %36 = dma.hbm_to_vmem [thread:$0]  %s2, 15104, %s31, [#allocation6], 128, 128, 8
    $region13: #{tpu_custom_call.1} parent=1 // pred_fallthru
      _
    // Predicated region
    $region14: #{tpu_custom_call.1} parent=1 // pred_check
      _
    $region15: #{tpu_custom_call.1} parent=1 // pred_check_branch
      %38 = sbr.rel (0) target = $region17
    $region16: #{tpu_custom_call.1} parent=1 // pred_region
      %39 = dma.done [#allocation3], 2048
    $region17: #{tpu_custom_call.1} parent=1 // pred_fallthru
      _
    // Predicated region
    $region18: #{tpu_custom_call.1} parent=1 // pred_check
      _
    $region19: #{tpu_custom_call.1} parent=1 // pred_check_branch
      %41 = sbr.rel (0) target = $region21
    $region20: #{tpu_custom_call.1} parent=1 // pred_region
      %42 = dma.done [#allocation6], 15104
    $region21: #{tpu_custom_call.1} parent=1 // pred_fallthru
      _
    %v43 = vld [vmem:[%s0] sm:$0xff]
    %v44 = vld [vmem:[%s0 + $0x8] sm:$0xff]
    %v45 = vlaneseq
    %v46 = vand.u32 %v45, 127
    %47 = vset.pattern.permute.xlu0 0
    %48 = vperm.xlu0 %47, %v43
    %v49 = vpop.permute.xlu0 %48
    %50 = vset.pattern.permute.xlu0 0
    %51 = vperm.xlu0 %50, %v44
    %v52 = vpop.permute.xlu0 %51
    %vm53 = vcmp.eq.s32.totalorder %v49, %v46
    %vm54 = vcmp.eq.s32.totalorder %v52, %v46
    %v55 = vsel %vm53, 1, 0
    %v56 = vsel %vm54, 1, 0
    %v57 = vcvt.s32.f32 %v55
    %v58 = vcvt.s32.f32 %v56
    %v59 = vld [vmem:[#allocation2] sm:$0xff]
    %v60 = vld [vmem:[#allocation2 + $0x8] sm:$0xff]
    %v61 = vld [vmem:[#allocation2 + $0x10] sm:$0xff]
    %v62 = vld [vmem:[#allocation2 + $0x18] sm:$0xff]
    %v63 = vld [vmem:[#allocation2 + $0x20] sm:$0xff]
    %v64 = vld [vmem:[#allocation2 + $0x28] sm:$0xff]
    %v65 = vld [vmem:[#allocation2 + $0x30] sm:$0xff]
    %v66 = vld [vmem:[#allocation2 + $0x38] sm:$0xff]
    %v67 = vld [vmem:[#allocation2 + $0x40] sm:$0xff]
    %v68 = vld [vmem:[#allocation2 + $0x48] sm:$0xff]
    %v69 = vld [vmem:[#allocation2 + $0x50] sm:$0xff]
    %v70 = vld [vmem:[#allocation2 + $0x58] sm:$0xff]
    %v71 = vld [vmem:[#allocation2 + $0x60] sm:$0xff]
    %v72 = vld [vmem:[#allocation2 + $0x68] sm:$0xff]
    %v73 = vld [vmem:[#allocation2 + $0x70] sm:$0xff]
    %v74 = vld [vmem:[#allocation2 + $0x78] sm:$0xff]
    %75 = vmatprep.subr.mxu0 0.0
    %76 = vmatpush1.msra.mxu0 %v74
    %77 = vmatprep.subr.mxu0 0.0
    %78 = vmatpush1.msra.mxu0 %v73
    %79 = vmatprep.subr.mxu0 0.0
    %80 = vmatpush1.msra.mxu0 %v72
    %81 = vmatprep.subr.mxu0 0.0
    %82 = vmatpush1.msra.mxu0 %v71
    %83 = vmatprep.subr.mxu0 0.0
    %84 = vmatpush1.msra.mxu0 %v70
    %85 = vmatprep.subr.mxu0 0.0
    %86 = vmatpush1.msra.mxu0 %v69
    %87 = vmatprep.subr.mxu0 0.0
    %88 = vmatpush1.msra.mxu0 %v68
    %89 = vmatprep.subr.mxu0 0.0
    %90 = vmatpush1.msra.mxu0 %v67
    %91 = vmatprep.subr.mxu0 0.0
    %92 = vmatpush1.msra.mxu0 %v66
    %93 = vmatprep.subr.mxu0 0.0
    %94 = vmatpush1.msra.mxu0 %v65
    %95 = vmatprep.subr.mxu0 0.0
    %96 = vmatpush1.msra.mxu0 %v64
    %97 = vmatprep.subr.mxu0 0.0
    %98 = vmatpush1.msra.mxu0 %v63
    %99 = vmatprep.subr.mxu0 0.0
    %100 = vmatpush1.msra.mxu0 %v62
    %101 = vmatprep.subr.mxu0 0.0
    %102 = vmatpush1.msra.mxu0 %v61
    %103 = vmatprep.subr.mxu0 0.0
    %104 = vmatpush1.msra.mxu0 %v60
    %105 = vmatprep.subr.mxu0 0.0
    %106 = vmatpush1.msra.mxu0 %v59
    %107 = vmatprep.subr.mxu0 0.0
    %108 = vmatpush2.msra.mxu0 0.0
    %109 = vmatprep.subr.mxu0 0.0
    %110 = vmatpush2.msra.mxu0 0.0
    %111 = vmatprep.subr.mxu0 0.0
    %112 = vmatpush2.msra.mxu0 0.0
    %113 = vmatprep.subr.mxu0 0.0
    %114 = vmatpush2.msra.mxu0 0.0
    %115 = vmatprep.subr.mxu0 0.0
    %116 = vmatpush2.msra.mxu0 0.0
    %117 = vmatprep.subr.mxu0 0.0
    %118 = vmatpush2.msra.mxu0 0.0
    %119 = vmatprep.subr.mxu0 0.0
    %120 = vmatpush2.msra.mxu0 0.0
    %121 = vmatprep.subr.mxu0 0.0
    %122 = vmatpush2.msra.mxu0 0.0
    %123 = vmatprep.subr.mxu0 0.0
    %124 = vmatpush2.msra.mxu0 0.0
    %125 = vmatprep.subr.mxu0 0.0
    %126 = vmatpush2.msra.mxu0 0.0
    %127 = vmatprep.subr.mxu0 0.0
    %128 = vmatpush2.msra.mxu0 0.0
    %129 = vmatprep.subr.mxu0 0.0
    %130 = vmatpush2.msra.mxu0 0.0
    %131 = vmatprep.subr.mxu0 0.0
    %132 = vmatpush2.msra.mxu0 0.0
    %133 = vmatprep.subr.mxu0 0.0
    %134 = vmatpush2.msra.mxu0 0.0
    %135 = vmatprep.subr.mxu0 0.0
    %136 = vmatpush2.msra.mxu0 0.0
    %137 = vmatprep.subr.mxu0 0.0
    %138 = vmatpush2.msra.mxu0 0.0
    %139 = vmatprep.mubr.f32.mxu0 0.0
    %140 = vmatmul.mubr.f32.gmra.mxu0 %v57
    %v141 = vpop.f32.mrf.mxu0
    %v142 = vadd.f32 0.0, %v141
    %v143 = vpop.f32.mrf.mxu0
    %144 = vmatprep.mubr.f32.mxu0 0.0
    %145 = vmatmul.mubr.f32.gmra.mxu0 %v58
    %v146 = vpop.f32.mrf.mxu0
    %v147 = vadd.f32 0.0, %v146
    %v148 = vpop.f32.mrf.mxu0
    %149 = vdwg.mxu0
    %v150 = vld [vmem:[#allocation5] sm:$0xff]
    %v151 = vld [vmem:[#allocation5 + $0x8] sm:$0xff]
    %v152 = vld [vmem:[#allocation5 + $0x10] sm:$0xff]
    %v153 = vld [vmem:[#allocation5 + $0x18] sm:$0xff]
    %v154 = vld [vmem:[#allocation5 + $0x20] sm:$0xff]
    %v155 = vld [vmem:[#allocation5 + $0x28] sm:$0xff]
    %v156 = vld [vmem:[#allocation5 + $0x30] sm:$0xff]
    %v157 = vld [vmem:[#allocation5 + $0x38] sm:$0xff]
    %v158 = vld [vmem:[#allocation5 + $0x40] sm:$0xff]
    %v159 = vld [vmem:[#allocation5 + $0x48] sm:$0xff]
    %v160 = vld [vmem:[#allocation5 + $0x50] sm:$0xff]
    %v161 = vld [vmem:[#allocation5 + $0x58] sm:$0xff]
    %v162 = vld [vmem:[#allocation5 + $0x60] sm:$0xff]
    %v163 = vld [vmem:[#allocation5 + $0x68] sm:$0xff]
    %v164 = vld [vmem:[#allocation5 + $0x70] sm:$0xff]
    %v165 = vld [vmem:[#allocation5 + $0x78] sm:$0xff]
    %v166 = vld [vmem:[#allocation5 + $0x180] sm:$0x1]
    %v167 = vlaneseq
    %v168 = vshrl.u32 %v167, 7
    %v169 = vsub.s32 0, %v168
    %v170 = vrot.slane %v166, %v169
    %171 = vmatprep.subr.mxu0 0.0
    %172 = vmatpush1.msra.mxu0 %v165
    %173 = vmatprep.subr.mxu0 0.0
    %174 = vmatpush1.msra.mxu0 %v164
    %175 = vmatprep.subr.mxu0 0.0
    %176 = vmatpush1.msra.mxu0 %v163
    %177 = vmatprep.subr.mxu0 0.0
    %178 = vmatpush1.msra.mxu0 %v162
    %179 = vmatprep.subr.mxu0 0.0
    %180 = vmatpush1.msra.mxu0 %v161
    %181 = vmatprep.subr.mxu0 0.0
    %182 = vmatpush1.msra.mxu0 %v160
    %183 = vmatprep.subr.mxu0 0.0
    %184 = vmatpush1.msra.mxu0 %v159
    %185 = vmatprep.subr.mxu0 0.0
    %186 = vmatpush1.msra.mxu0 %v158
    %187 = vmatprep.subr.mxu0 0.0
    %188 = vmatpush1.msra.mxu0 %v157
    %189 = vmatprep.subr.mxu0 0.0
    %190 = vmatpush1.msra.mxu0 %v156
    %191 = vmatprep.subr.mxu0 0.0
    %192 = vmatpush1.msra.mxu0 %v155
    %193 = vmatprep.subr.mxu0 0.0
    %194 = vmatpush1.msra.mxu0 %v154
    %195 = vmatprep.subr.mxu0 0.0
    %196 = vmatpush1.msra.mxu0 %v153
    %197 = vmatprep.subr.mxu0 0.0
    %198 = vmatpush1.msra.mxu0 %v152
    %199 = vmatprep.subr.mxu0 0.0
    %200 = vmatpush1.msra.mxu0 %v151
    %201 = vmatprep.subr.mxu0 0.0
    %202 = vmatpush1.msra.mxu0 %v150
    %203 = vmatprep.subr.mxu0 0.0
    %204 = vmatpush2.msra.mxu0 0.0
    %205 = vmatprep.subr.mxu0 0.0
    %206 = vmatpush2.msra.mxu0 0.0
    %207 = vmatprep.subr.mxu0 0.0
    %208 = vmatpush2.msra.mxu0 0.0
    %209 = vmatprep.subr.mxu0 0.0
    %210 = vmatpush2.msra.mxu0 0.0
    %211 = vmatprep.subr.mxu0 0.0
    %212 = vmatpush2.msra.mxu0 0.0
    %213 = vmatprep.subr.mxu0 0.0
    %214 = vmatpush2.msra.mxu0 0.0
    %215 = vmatprep.subr.mxu0 0.0
    %216 = vmatpush2.msra.mxu0 0.0
    %217 = vmatprep.subr.mxu0 0.0
    %218 = vmatpush2.msra.mxu0 0.0
    %219 = vmatprep.subr.mxu0 0.0
    %220 = vmatpush2.msra.mxu0 0.0
    %221 = vmatprep.subr.mxu0 0.0
    %222 = vmatpush2.msra.mxu0 0.0
    %223 = vmatprep.subr.mxu0 0.0
    %224 = vmatpush2.msra.mxu0 0.0
    %225 = vmatprep.subr.mxu0 0.0
    %226 = vmatpush2.msra.mxu0 0.0
    %227 = vmatprep.subr.mxu0 0.0
    %228 = vmatpush2.msra.mxu0 0.0
    %229 = vmatprep.subr.mxu0 0.0
    %230 = vmatpush2.msra.mxu0 0.0
    %231 = vmatprep.subr.mxu0 0.0
    %232 = vmatpush2.msra.mxu0 0.0
    %233 = vmatprep.subr.mxu0 0.0
    %234 = vmatpush2.msra.mxu0 0.0
    %235 = vmatprep.mubr.f32.mxu0 0.0
    %236 = vmatmul.mubr.f32.gmra.mxu0 %v142
    %v237 = vpop.f32.mrf.mxu0
    %v238 = vadd.f32 %v170, %v237
    %v239 = vpop.f32.mrf.mxu0
    %240 = vdwg.mxu0
    %v241 = vld [vmem:[#allocation5 + $0x80] sm:$0xff]
    %v242 = vld [vmem:[#allocation5 + $0x88] sm:$0xff]
    %v243 = vld [vmem:[#allocation5 + $0x90] sm:$0xff]
    %v244 = vld [vmem:[#allocation5 + $0x98] sm:$0xff]
    %v245 = vld [vmem:[#allocation5 + $0xa0] sm:$0xff]
    %v246 = vld [vmem:[#allocation5 + $0xa8] sm:$0xff]
    %v247 = vld [vmem:[#allocation5 + $0xb0] sm:$0xff]
    %v248 = vld [vmem:[#allocation5 + $0xb8] sm:$0xff]
    %v249 = vld [vmem:[#allocation5 + $0xc0] sm:$0xff]
    %v250 = vld [vmem:[#allocation5 + $0xc8] sm:$0xff]
    %v251 = vld [vmem:[#allocation5 + $0xd0] sm:$0xff]
    %v252 = vld [vmem:[#allocation5 + $0xd8] sm:$0xff]
    %v253 = vld [vmem:[#allocation5 + $0xe0] sm:$0xff]
    %v254 = vld [vmem:[#allocation5 + $0xe8] sm:$0xff]
    %v255 = vld [vmem:[#allocation5 + $0xf0] sm:$0xff]
    %v256 = vld [vmem:[#allocation5 + $0xf8] sm:$0xff]
    %v257 = vld [vmem:[#allocation5 + $0x188] sm:$0x1]
    %v258 = vlaneseq
    %v259 = vshrl.u32 %v258, 7
    %v260 = vsub.s32 0, %v259
    %v261 = vrot.slane %v257, %v260
    %262 = vmatprep.subr.mxu0 0.0
    %263 = vmatpush1.msra.mxu0 %v256
    %264 = vmatprep.subr.mxu0 0.0
    %265 = vmatpush1.msra.mxu0 %v255
    %266 = vmatprep.subr.mxu0 0.0
    %267 = vmatpush1.msra.mxu0 %v254
    %268 = vmatprep.subr.mxu0 0.0
    %269 = vmatpush1.msra.mxu0 %v253
    %270 = vmatprep.subr.mxu0 0.0
    %271 = vmatpush1.msra.mxu0 %v252
    %272 = vmatprep.subr.mxu0 0.0
    %273 = vmatpush1.msra.mxu0 %v251
    %274 = vmatprep.subr.mxu0 0.0
    %275 = vmatpush1.msra.mxu0 %v250
    %276 = vmatprep.subr.mxu0 0.0
    %277 = vmatpush1.msra.mxu0 %v249
    %278 = vmatprep.subr.mxu0 0.0
    %279 = vmatpush1.msra.mxu0 %v248
    %280 = vmatprep.subr.mxu0 0.0
    %281 = vmatpush1.msra.mxu0 %v247
    %282 = vmatprep.subr.mxu0 0.0
    %283 = vmatpush1.msra.mxu0 %v246
    %284 = vmatprep.subr.mxu0 0.0
    %285 = vmatpush1.msra.mxu0 %v245
    %286 = vmatprep.subr.mxu0 0.0
    %287 = vmatpush1.msra.mxu0 %v244
    %288 = vmatprep.subr.mxu0 0.0
    %289 = vmatpush1.msra.mxu0 %v243
    %290 = vmatprep.subr.mxu0 0.0
    %291 = vmatpush1.msra.mxu0 %v242
    %292 = vmatprep.subr.mxu0 0.0
    %293 = vmatpush1.msra.mxu0 %v241
    %294 = vmatprep.subr.mxu0 0.0
    %295 = vmatpush2.msra.mxu0 0.0
    %296 = vmatprep.subr.mxu0 0.0
    %297 = vmatpush2.msra.mxu0 0.0
    %298 = vmatprep.subr.mxu0 0.0
    %299 = vmatpush2.msra.mxu0 0.0
    %300 = vmatprep.subr.mxu0 0.0
    %301 = vmatpush2.msra.mxu0 0.0
    %302 = vmatprep.subr.mxu0 0.0
    %303 = vmatpush2.msra.mxu0 0.0
    %304 = vmatprep.subr.mxu0 0.0
    %305 = vmatpush2.msra.mxu0 0.0
    %306 = vmatprep.subr.mxu0 0.0
    %307 = vmatpush2.msra.mxu0 0.0
    %308 = vmatprep.subr.mxu0 0.0
    %309 = vmatpush2.msra.mxu0 0.0
    %310 = vmatprep.subr.mxu0 0.0
    %311 = vmatpush2.msra.mxu0 0.0
    %312 = vmatprep.subr.mxu0 0.0
    %313 = vmatpush2.msra.mxu0 0.0
    %314 = vmatprep.subr.mxu0 0.0
    %315 = vmatpush2.msra.mxu0 0.0
    %316 = vmatprep.subr.mxu0 0.0
    %317 = vmatpush2.msra.mxu0 0.0
    %318 = vmatprep.subr.mxu0 0.0
    %319 = vmatpush2.msra.mxu0 0.0
    %320 = vmatprep.subr.mxu0 0.0
    %321 = vmatpush2.msra.mxu0 0.0
    %322 = vmatprep.subr.mxu0 0.0
    %323 = vmatpush2.msra.mxu0 0.0
    %324 = vmatprep.subr.mxu0 0.0
    %325 = vmatpush2.msra.mxu0 0.0
    %326 = vmatprep.mubr.f32.mxu0 0.0
    %327 = vmatmul.mubr.f32.gmra.mxu0 %v147
    %v328 = vpop.f32.mrf.mxu0
    %v329 = vadd.f32 %v261, %v328
    %v330 = vpop.f32.mrf.mxu0
    %331 = vdwg.mxu0
    %v332 = vld [vmem:[#allocation5 + $0x100] sm:$0xff]
    %v333 = vld [vmem:[#allocation5 + $0x108] sm:$0xff]
    %v334 = vld [vmem:[#allocation5 + $0x110] sm:$0xff]
    %v335 = vld [vmem:[#allocation5 + $0x118] sm:$0xff]
    %v336 = vld [vmem:[#allocation5 + $0x120] sm:$0xff]
    %v337 = vld [vmem:[#allocation5 + $0x128] sm:$0xff]
    %v338 = vld [vmem:[#allocation5 + $0x130] sm:$0xff]
    %v339 = vld [vmem:[#allocation5 + $0x138] sm:$0xff]
    %v340 = vld [vmem:[#allocation5 + $0x140] sm:$0xff]
    %v341 = vld [vmem:[#allocation5 + $0x148] sm:$0xff]
    %v342 = vld [vmem:[#allocation5 + $0x150] sm:$0xff]
    %v343 = vld [vmem:[#allocation5 + $0x158] sm:$0xff]
    %v344 = vld [vmem:[#allocation5 + $0x160] sm:$0xff]
    %v345 = vld [vmem:[#allocation5 + $0x168] sm:$0xff]
    %v346 = vld [vmem:[#allocation5 + $0x170] sm:$0xff]
    %v347 = vld [vmem:[#allocation5 + $0x178] sm:$0xff]
    %v348 = vld [vmem:[#allocation5 + $0x190] sm:$0x1]
    %v349 = vlaneseq
    %v350 = vshrl.u32 %v349, 7
    %v351 = vsub.s32 0, %v350
    %v352 = vrot.slane %v348, %v351
    %353 = vmatprep.subr.mxu0 0.0
    %354 = vmatpush1.msra.mxu0 %v347
    %355 = vmatprep.subr.mxu0 0.0
    %356 = vmatpush1.msra.mxu0 %v346
    %357 = vmatprep.subr.mxu0 0.0
    %358 = vmatpush1.msra.mxu0 %v345
    %359 = vmatprep.subr.mxu0 0.0
    %360 = vmatpush1.msra.mxu0 %v344
    %361 = vmatprep.subr.mxu0 0.0
    %362 = vmatpush1.msra.mxu0 %v343
    %363 = vmatprep.subr.mxu0 0.0
    %364 = vmatpush1.msra.mxu0 %v342
    %365 = vmatprep.subr.mxu0 0.0
    %366 = vmatpush1.msra.mxu0 %v341
    %367 = vmatprep.subr.mxu0 0.0
    %368 = vmatpush1.msra.mxu0 %v340
    %369 = vmatprep.subr.mxu0 0.0
    %370 = vmatpush1.msra.mxu0 %v339
    %371 = vmatprep.subr.mxu0 0.0
    %372 = vmatpush1.msra.mxu0 %v338
    %373 = vmatprep.subr.mxu0 0.0
    %374 = vmatpush1.msra.mxu0 %v337
    %375 = vmatprep.subr.mxu0 0.0
    %376 = vmatpush1.msra.mxu0 %v336
    %377 = vmatprep.subr.mxu0 0.0
    %378 = vmatpush1.msra.mxu0 %v335
    %379 = vmatprep.subr.mxu0 0.0
    %380 = vmatpush1.msra.mxu0 %v334
    %381 = vmatprep.subr.mxu0 0.0
    %382 = vmatpush1.msra.mxu0 %v333
    %383 = vmatprep.subr.mxu0 0.0
    %384 = vmatpush1.msra.mxu0 %v332
    %385 = vmatprep.subr.mxu0 0.0
    %386 = vmatpush2.msra.mxu0 0.0
    %387 = vmatprep.subr.mxu0 0.0
    %388 = vmatpush2.msra.mxu0 0.0
    %389 = vmatprep.subr.mxu0 0.0
    %390 = vmatpush2.msra.mxu0 0.0
    %391 = vmatprep.subr.mxu0 0.0
    %392 = vmatpush2.msra.mxu0 0.0
    %393 = vmatprep.subr.mxu0 0.0
    %394 = vmatpush2.msra.mxu0 0.0
    %395 = vmatprep.subr.mxu0 0.0
    %396 = vmatpush2.msra.mxu0 0.0
    %397 = vmatprep.subr.mxu0 0.0
    %398 = vmatpush2.msra.mxu0 0.0
    %399 = vmatprep.subr.mxu0 0.0
    %400 = vmatpush2.msra.mxu0 0.0
    %401 = vmatprep.subr.mxu0 0.0
    %402 = vmatpush2.msra.mxu0 0.0
    %403 = vmatprep.subr.mxu0 0.0
    %404 = vmatpush2.msra.mxu0 0.0
    %405 = vmatprep.subr.mxu0 0.0
    %406 = vmatpush2.msra.mxu0 0.0
    %407 = vmatprep.subr.mxu0 0.0
    %408 = vmatpush2.msra.mxu0 0.0
    %409 = vmatprep.subr.mxu0 0.0
    %410 = vmatpush2.msra.mxu0 0.0
    %411 = vmatprep.subr.mxu0 0.0
    %412 = vmatpush2.msra.mxu0 0.0
    %413 = vmatprep.subr.mxu0 0.0
    %414 = vmatpush2.msra.mxu0 0.0
    %415 = vmatprep.subr.mxu0 0.0
    %416 = vmatpush2.msra.mxu0 0.0
    %417 = vmatprep.mubr.f32.mxu0 0.0
    %418 = vmatmul.mubr.f32.gmra.mxu0 %v147
    %v419 = vpop.f32.mrf.mxu0
    %v420 = vadd.f32 %v352, %v419
    %v421 = vpop.f32.mrf.mxu0
    %422 = vdwg.mxu0
    %423 = vmatprep.subr.mxu0 0.0
    %424 = vmatpush1.xpose.msra.mxu0 0.0
    %425 = vmatprep.subr.mxu0 0.0
    %426 = vmatpush1.xpose.msra.mxu0 0.0
    %427 = vmatprep.subr.mxu0 0.0
    %428 = vmatpush1.xpose.msra.mxu0 0.0
    %429 = vmatprep.subr.mxu0 0.0
    %430 = vmatpush1.xpose.msra.mxu0 0.0
    %431 = vmatprep.subr.mxu0 0.0
    %432 = vmatpush1.xpose.msra.mxu0 0.0
    %433 = vmatprep.subr.mxu0 0.0
    %434 = vmatpush1.xpose.msra.mxu0 0.0
    %435 = vmatprep.subr.mxu0 0.0
    %436 = vmatpush1.xpose.msra.mxu0 0.0
    %437 = vmatprep.subr.mxu0 0.0
    %438 = vmatpush1.xpose.msra.mxu0 0.0
    %439 = vmatprep.subr.mxu0 0.0
    %440 = vmatpush1.xpose.msra.mxu0 0.0
    %441 = vmatprep.subr.mxu0 0.0
    %442 = vmatpush1.xpose.msra.mxu0 0.0
    %443 = vmatprep.subr.mxu0 0.0
    %444 = vmatpush1.xpose.msra.mxu0 0.0
    %445 = vmatprep.subr.mxu0 0.0
    %446 = vmatpush1.xpose.msra.mxu0 0.0
    %447 = vmatprep.subr.mxu0 0.0
    %448 = vmatpush1.xpose.msra.mxu0 0.0
    %449 = vmatprep.subr.mxu0 0.0
    %450 = vmatpush1.xpose.msra.mxu0 0.0
    %451 = vmatprep.subr.mxu0 0.0
    %452 = vmatpush1.xpose.msra.mxu0 0.0
    %453 = vmatprep.subr.mxu0 0.0
    %454 = vmatpush1.xpose.msra.mxu0 %v329
    %455 = vmatprep.subr.mxu0 0.0
    %456 = vmatpush2.xpose.msra.mxu0 0.0
    %457 = vmatprep.subr.mxu0 0.0
    %458 = vmatpush2.xpose.msra.mxu0 0.0
    %459 = vmatprep.subr.mxu0 0.0
    %460 = vmatpush2.xpose.msra.mxu0 0.0
    %461 = vmatprep.subr.mxu0 0.0
    %462 = vmatpush2.xpose.msra.mxu0 0.0
    %463 = vmatprep.subr.mxu0 0.0
    %464 = vmatpush2.xpose.msra.mxu0 0.0
    %465 = vmatprep.subr.mxu0 0.0
    %466 = vmatpush2.xpose.msra.mxu0 0.0
    %467 = vmatprep.subr.mxu0 0.0
    %468 = vmatpush2.xpose.msra.mxu0 0.0
    %469 = vmatprep.subr.mxu0 0.0
    %470 = vmatpush2.xpose.msra.mxu0 0.0
    %471 = vmatprep.subr.mxu0 0.0
    %472 = vmatpush2.xpose.msra.mxu0 0.0
    %473 = vmatprep.subr.mxu0 0.0
    %474 = vmatpush2.xpose.msra.mxu0 0.0
    %475 = vmatprep.subr.mxu0 0.0
    %476 = vmatpush2.xpose.msra.mxu0 0.0
    %477 = vmatprep.subr.mxu0 0.0
    %478 = vmatpush2.xpose.msra.mxu0 0.0
    %479 = vmatprep.subr.mxu0 0.0
    %480 = vmatpush2.xpose.msra.mxu0 0.0
    %481 = vmatprep.subr.mxu0 0.0
    %482 = vmatpush2.xpose.msra.mxu0 0.0
    %483 = vmatprep.subr.mxu0 0.0
    %484 = vmatpush2.xpose.msra.mxu0 0.0
    %485 = vmatprep.subr.mxu0 0.0
    %486 = vmatpush2.xpose.msra.mxu0 0.0
    %487 = vmatprep.mubr.f32.mxu0 0.0
    %488 = vmatmul.mubr.f32.gmra.mxu0 %v238
    %v489 = vpop.f32.mrf.mxu0
    %v490 = vadd.f32 0.0, %v489
    %v491 = vpop.f32.mrf.mxu0
    %492 = vdwg.mxu0
    %v493 = vmul.f32 %v490, 0.25
    %vm494 = vcmask 64512
    %v495 = vsel %vm494, %v493, -inf
    %496 = vmax.xlane.f32.xlu0 %v495
    %v497 = vpop.xlane.xlu0 %496
    %v498 = vsub.f32 %v493, %v497
    %v499 = vmul.f32 %v498, 1.442695
    %v500 = vpow.pop %v499
    %v501 = vsel %vm494, %v500, 0.0
    %502 = vadd.xlane.f32.xlu0 %v501
    %v503 = vpop.xlane.xlu0 %502
    %v504 = vrcp.pop %v503
    %v505 = vmul.f32 %v503, %v504
    %v506 = vsub.f32 2.0, %v505
    %v507 = vmul.f32 %v504, %v506
    %v508 = vmul.f32 %v500, %v507
    %v510 = vsel %vm494, %v508, 0
    %512 = vmatprep.subr.mxu0 0.0
    %513 = vmatpush1.msra.mxu0 0.0
    %514 = vmatprep.subr.mxu0 0.0
    %515 = vmatpush1.msra.mxu0 0.0
    %516 = vmatprep.subr.mxu0 0.0
    %517 = vmatpush1.msra.mxu0 0.0
    %518 = vmatprep.subr.mxu0 0.0
    %519 = vmatpush1.msra.mxu0 0.0
    %520 = vmatprep.subr.mxu0 0.0
    %521 = vmatpush1.msra.mxu0 0.0
    %522 = vmatprep.subr.mxu0 0.0
    %523 = vmatpush1.msra.mxu0 0.0
    %524 = vmatprep.subr.mxu0 0.0
    %525 = vmatpush1.msra.mxu0 0.0
    %526 = vmatprep.subr.mxu0 0.0
    %527 = vmatpush1.msra.mxu0 0.0
    %528 = vmatprep.subr.mxu0 0.0
    %529 = vmatpush1.msra.mxu0 0.0
    %530 = vmatprep.subr.mxu0 0.0
    %531 = vmatpush1.msra.mxu0 0.0
    %532 = vmatprep.subr.mxu0 0.0
    %533 = vmatpush1.msra.mxu0 0.0
    %534 = vmatprep.subr.mxu0 0.0
    %535 = vmatpush1.msra.mxu0 0.0
    %536 = vmatprep.subr.mxu0 0.0
    %537 = vmatpush1.msra.mxu0 0.0
    %538 = vmatprep.subr.mxu0 0.0
    %539 = vmatpush1.msra.mxu0 0.0
    %540 = vmatprep.subr.mxu0 0.0
    %541 = vmatpush1.msra.mxu0 0.0
    %542 = vmatprep.subr.mxu0 0.0
    %543 = vmatpush1.msra.mxu0 %v420
    %544 = vmatprep.subr.mxu0 0.0
    %545 = vmatpush2.msra.mxu0 0.0
    %546 = vmatprep.subr.mxu0 0.0
    %547 = vmatpush2.msra.mxu0 0.0
    %548 = vmatprep.subr.mxu0 0.0
    %549 = vmatpush2.msra.mxu0 0.0
    %550 = vmatprep.subr.mxu0 0.0
    %551 = vmatpush2.msra.mxu0 0.0
    %552 = vmatprep.subr.mxu0 0.0
    %553 = vmatpush2.msra.mxu0 0.0
    %554 = vmatprep.subr.mxu0 0.0
    %555 = vmatpush2.msra.mxu0 0.0
    %556 = vmatprep.subr.mxu0 0.0
    %557 = vmatpush2.msra.mxu0 0.0
    %558 = vmatprep.subr.mxu0 0.0
    %559 = vmatpush2.msra.mxu0 0.0
    %560 = vmatprep.subr.mxu0 0.0
    %561 = vmatpush2.msra.mxu0 0.0
    %562 = vmatprep.subr.mxu0 0.0
    %563 = vmatpush2.msra.mxu0 0.0
    %564 = vmatprep.subr.mxu0 0.0
    %565 = vmatpush2.msra.mxu0 0.0
    %566 = vmatprep.subr.mxu0 0.0
    %567 = vmatpush2.msra.mxu0 0.0
    %568 = vmatprep.subr.mxu0 0.0
    %569 = vmatpush2.msra.mxu0 0.0
    %570 = vmatprep.subr.mxu0 0.0
    %571 = vmatpush2.msra.mxu0 0.0
    %572 = vmatprep.subr.mxu0 0.0
    %573 = vmatpush2.msra.mxu0 0.0
    %574 = vmatprep.subr.mxu0 0.0
    %575 = vmatpush2.msra.mxu0 0.0
    %576 = vmatprep.mubr.f32.mxu0 0.0
    %577 = vmatmul.mubr.f32.gmra.mxu0 %v510
    %v578 = vpop.f32.mrf.mxu0
    %v579 = vadd.f32 0.0, %v578
    %v580 = vpop.f32.mrf.mxu0
    %581 = vdwg.mxu0
    %v582 = vld [vmem:[#allocation5 + $0x198] sm:$0xff]
    %v583 = vld [vmem:[#allocation5 + $0x1a0] sm:$0xff]
    %v584 = vld [vmem:[#allocation5 + $0x1a8] sm:$0xff]
    %v585 = vld [vmem:[#allocation5 + $0x1b0] sm:$0xff]
    %v586 = vld [vmem:[#allocation5 + $0x1b8] sm:$0xff]
    %v587 = vld [vmem:[#allocation5 + $0x1c0] sm:$0xff]
    %v588 = vld [vmem:[#allocation5 + $0x1c8] sm:$0xff]
    %v589 = vld [vmem:[#allocation5 + $0x1d0] sm:$0xff]
    %v590 = vld [vmem:[#allocation5 + $0x1d8] sm:$0xff]
    %v591 = vld [vmem:[#allocation5 + $0x1e0] sm:$0xff]
    %v592 = vld [vmem:[#allocation5 + $0x1e8] sm:$0xff]
    %v593 = vld [vmem:[#allocation5 + $0x1f0] sm:$0xff]
    %v594 = vld [vmem:[#allocation5 + $0x1f8] sm:$0xff]
    %v595 = vld [vmem:[#allocation5 + $0x200] sm:$0xff]
    %v596 = vld [vmem:[#allocation5 + $0x208] sm:$0xff]
    %v597 = vld [vmem:[#allocation5 + $0x210] sm:$0xff]
    %v598 = vld [vmem:[#allocation5 + $0x218] sm:$0xff]
    %v599 = vld [vmem:[#allocation5 + $0x220] sm:$0xff]
    %v600 = vld [vmem:[#allocation5 + $0x228] sm:$0xff]
    %v601 = vld [vmem:[#allocation5 + $0x230] sm:$0xff]
    %v602 = vld [vmem:[#allocation5 + $0x238] sm:$0xff]
    %v603 = vld [vmem:[#allocation5 + $0x240] sm:$0xff]
    %v604 = vld [vmem:[#allocation5 + $0x248] sm:$0xff]
    %v605 = vld [vmem:[#allocation5 + $0x250] sm:$0xff]
    %v606 = vld [vmem:[#allocation5 + $0x258] sm:$0xff]
    %v607 = vld [vmem:[#allocation5 + $0x260] sm:$0xff]
    %v608 = vld [vmem:[#allocation5 + $0x268] sm:$0xff]
    %v609 = vld [vmem:[#allocation5 + $0x270] sm:$0xff]
    %v610 = vld [vmem:[#allocation5 + $0x278] sm:$0xff]
    %v611 = vld [vmem:[#allocation5 + $0x280] sm:$0xff]
    %v612 = vld [vmem:[#allocation5 + $0x288] sm:$0xff]
    %v613 = vld [vmem:[#allocation5 + $0x290] sm:$0xff]
    %614 = vmatprep.subr.mxu0 0.0
    %615 = vmatpush1.msra.mxu0 %v613
    %616 = vmatprep.subr.mxu0 0.0
    %617 = vmatpush1.msra.mxu0 %v612
    %618 = vmatprep.subr.mxu0 0.0
    %619 = vmatpush1.msra.mxu0 %v611
    %620 = vmatprep.subr.mxu0 0.0
    %621 = vmatpush1.msra.mxu0 %v610
    %622 = vmatprep.subr.mxu0 0.0
    %623 = vmatpush1.msra.mxu0 %v609
    %624 = vmatprep.subr.mxu0 0.0
    %625 = vmatpush1.msra.mxu0 %v608
    %626 = vmatprep.subr.mxu0 0.0
    %627 = vmatpush1.msra.mxu0 %v607
    %628 = vmatprep.subr.mxu0 0.0
    %629 = vmatpush1.msra.mxu0 %v606
    %630 = vmatprep.subr.mxu0 0.0
    %631 = vmatpush1.msra.mxu0 %v605
    %632 = vmatprep.subr.mxu0 0.0
    %633 = vmatpush1.msra.mxu0 %v604
    %634 = vmatprep.subr.mxu0 0.0
    %635 = vmatpush1.msra.mxu0 %v603
    %636 = vmatprep.subr.mxu0 0.0
    %637 = vmatpush1.msra.mxu0 %v602
    %638 = vmatprep.subr.mxu0 0.0
    %639 = vmatpush1.msra.mxu0 %v601
    %640 = vmatprep.subr.mxu0 0.0
    %641 = vmatpush1.msra.mxu0 %v600
    %642 = vmatprep.subr.mxu0 0.0
    %643 = vmatpush1.msra.mxu0 %v599
    %644 = vmatprep.subr.mxu0 0.0
    %645 = vmatpush1.msra.mxu0 %v598
    %646 = vmatprep.subr.mxu0 0.0
    %647 = vmatpush2.msra.mxu0 0.0
    %648 = vmatprep.subr.mxu0 0.0
    %649 = vmatpush2.msra.mxu0 0.0
    %650 = vmatprep.subr.mxu0 0.0
    %651 = vmatpush2.msra.mxu0 0.0
    %652 = vmatprep.subr.mxu0 0.0
    %653 = vmatpush2.msra.mxu0 0.0
    %654 = vmatprep.subr.mxu0 0.0
    %655 = vmatpush2.msra.mxu0 0.0
    %656 = vmatprep.subr.mxu0 0.0
    %657 = vmatpush2.msra.mxu0 0.0
    %658 = vmatprep.subr.mxu0 0.0
    %659 = vmatpush2.msra.mxu0 0.0
    %660 = vmatprep.subr.mxu0 0.0
    %661 = vmatpush2.msra.mxu0 0.0
    %662 = vmatprep.subr.mxu0 0.0
    %663 = vmatpush2.msra.mxu0 0.0
    %664 = vmatprep.subr.mxu0 0.0
    %665 = vmatpush2.msra.mxu0 0.0
    %666 = vmatprep.subr.mxu0 0.0
    %667 = vmatpush2.msra.mxu0 0.0
    %668 = vmatprep.subr.mxu0 0.0
    %669 = vmatpush2.msra.mxu0 0.0
    %670 = vmatprep.subr.mxu0 0.0
    %671 = vmatpush2.msra.mxu0 0.0
    %672 = vmatprep.subr.mxu0 0.0
    %673 = vmatpush2.msra.mxu0 0.0
    %674 = vmatprep.subr.mxu0 0.0
    %675 = vmatpush2.msra.mxu0 0.0
    %676 = vmatprep.subr.mxu0 0.0
    %677 = vmatpush2.msra.mxu0 0.0
    %678 = vmatprep.mubr.f32.mxu0 0.0
    %679 = vmatmul.mubr.f32.gmra.mxu0 %v579
    %v680 = vpop.f32.mrf.mxu0
    %v681 = vadd.f32 0.0, %v680
    %v682 = vpop.f32.mrf.mxu0
    %683 = vdwg.mxu0
    %684 = vmatprep.subr.mxu0 0.0
    %685 = vmatpush1.msra.mxu0 %v597
    %686 = vmatprep.subr.mxu0 0.0
    %687 = vmatpush1.msra.mxu0 %v596
    %688 = vmatprep.subr.mxu0 0.0
    %689 = vmatpush1.msra.mxu0 %v595
    %690 = vmatprep.subr.mxu0 0.0
    %691 = vmatpush1.msra.mxu0 %v594
    %692 = vmatprep.subr.mxu0 0.0
    %693 = vmatpush1.msra.mxu0 %v593
    %694 = vmatprep.subr.mxu0 0.0
    %695 = vmatpush1.msra.mxu0 %v592
    %696 = vmatprep.subr.mxu0 0.0
    %697 = vmatpush1.msra.mxu0 %v591
    %698 = vmatprep.subr.mxu0 0.0
    %699 = vmatpush1.msra.mxu0 %v590
    %700 = vmatprep.subr.mxu0 0.0
    %701 = vmatpush1.msra.mxu0 %v589
    %702 = vmatprep.subr.mxu0 0.0
    %703 = vmatpush1.msra.mxu0 %v588
    %704 = vmatprep.subr.mxu0 0.0
    %705 = vmatpush1.msra.mxu0 %v587
    %706 = vmatprep.subr.mxu0 0.0
    %707 = vmatpush1.msra.mxu0 %v586
    %708 = vmatprep.subr.mxu0 0.0
    %709 = vmatpush1.msra.mxu0 %v585
    %710 = vmatprep.subr.mxu0 0.0
    %711 = vmatpush1.msra.mxu0 %v584
    %712 = vmatprep.subr.mxu0 0.0
    %713 = vmatpush1.msra.mxu0 %v583
    %714 = vmatprep.subr.mxu0 0.0
    %715 = vmatpush1.msra.mxu0 %v582
    %716 = vmatprep.subr.mxu0 0.0
    %717 = vmatpush2.msra.mxu0 0.0
    %718 = vmatprep.subr.mxu0 0.0
    %719 = vmatpush2.msra.mxu0 0.0
    %720 = vmatprep.subr.mxu0 0.0
    %721 = vmatpush2.msra.mxu0 0.0
    %722 = vmatprep.subr.mxu0 0.0
    %723 = vmatpush2.msra.mxu0 0.0
    %724 = vmatprep.subr.mxu0 0.0
    %725 = vmatpush2.msra.mxu0 0.0
    %726 = vmatprep.subr.mxu0 0.0
    %727 = vmatpush2.msra.mxu0 0.0
    %728 = vmatprep.subr.mxu0 0.0
    %729 = vmatpush2.msra.mxu0 0.0
    %730 = vmatprep.subr.mxu0 0.0
    %731 = vmatpush2.msra.mxu0 0.0
    %732 = vmatprep.subr.mxu0 0.0
    %733 = vmatpush2.msra.mxu0 0.0
    %734 = vmatprep.subr.mxu0 0.0
    %735 = vmatpush2.msra.mxu0 0.0
    %736 = vmatprep.subr.mxu0 0.0
    %737 = vmatpush2.msra.mxu0 0.0
    %738 = vmatprep.subr.mxu0 0.0
    %739 = vmatpush2.msra.mxu0 0.0
    %740 = vmatprep.subr.mxu0 0.0
    %741 = vmatpush2.msra.mxu0 0.0
    %742 = vmatprep.subr.mxu0 0.0
    %743 = vmatpush2.msra.mxu0 0.0
    %744 = vmatprep.subr.mxu0 0.0
    %745 = vmatpush2.msra.mxu0 0.0
    %746 = vmatprep.subr.mxu0 0.0
    %747 = vmatpush2.msra.mxu0 0.0
    %748 = vmatprep.mubr.f32.mxu0 0.0
    %749 = vmatmul.mubr.f32.gmra.mxu0 %v142
    %v750 = vpop.f32.mrf.mxu0
    %v751 = vadd.f32 %v681, %v750
    %v752 = vpop.f32.mrf.mxu0
    %753 = vdwg.mxu0
    %v754 = vld [vmem:[#allocation5 + $0x298] sm:$0x1]
    %v755 = vlaneseq
    %v756 = vshrl.u32 %v755, 7
    %v757 = vsub.s32 0, %v756
    %v758 = vrot.slane %v754, %v757
    %v759 = vadd.f32 %v751, %v758
    %v760 = vmax.f32 %v759, 0.0
    %v761 = vld [vmem:[#allocation5 + $0x2a0] sm:$0xff]
    %v762 = vld [vmem:[#allocation5 + $0x2a8] sm:$0xff]
    %v763 = vld [vmem:[#allocation5 + $0x2b0] sm:$0xff]
    %v764 = vld [vmem:[#allocation5 + $0x2b8] sm:$0xff]
    %v765 = vld [vmem:[#allocation5 + $0x2c0] sm:$0xff]
    %v766 = vld [vmem:[#allocation5 + $0x2c8] sm:$0xff]
    %v767 = vld [vmem:[#allocation5 + $0x2d0] sm:$0xff]
    %v768 = vld [vmem:[#allocation5 + $0x2d8] sm:$0xff]
    %v769 = vld [vmem:[#allocation5 + $0x2e0] sm:$0xff]
    %v770 = vld [vmem:[#allocation5 + $0x2e8] sm:$0xff]
    %v771 = vld [vmem:[#allocation5 + $0x2f0] sm:$0xff]
    %v772 = vld [vmem:[#allocation5 + $0x2f8] sm:$0xff]
    %v773 = vld [vmem:[#allocation5 + $0x300] sm:$0xff]
    %v774 = vld [vmem:[#allocation5 + $0x308] sm:$0xff]
    %v775 = vld [vmem:[#allocation5 + $0x310] sm:$0xff]
    %v776 = vld [vmem:[#allocation5 + $0x318] sm:$0xff]
    %v777 = vld [vmem:[#allocation5 + $0x320] sm:$0x1]
    %v778 = vlaneseq
    %v779 = vshrl.u32 %v778, 7
    %v780 = vsub.s32 0, %v779
    %v781 = vrot.slane %v777, %v780
    %782 = vmatprep.subr.mxu0 0.0
    %783 = vmatpush1.msra.mxu0 %v776
    %784 = vmatprep.subr.mxu0 0.0
    %785 = vmatpush1.msra.mxu0 %v775
    %786 = vmatprep.subr.mxu0 0.0
    %787 = vmatpush1.msra.mxu0 %v774
    %788 = vmatprep.subr.mxu0 0.0
    %789 = vmatpush1.msra.mxu0 %v773
    %790 = vmatprep.subr.mxu0 0.0
    %791 = vmatpush1.msra.mxu0 %v772
    %792 = vmatprep.subr.mxu0 0.0
    %793 = vmatpush1.msra.mxu0 %v771
    %794 = vmatprep.subr.mxu0 0.0
    %795 = vmatpush1.msra.mxu0 %v770
    %796 = vmatprep.subr.mxu0 0.0
    %797 = vmatpush1.msra.mxu0 %v769
    %798 = vmatprep.subr.mxu0 0.0
    %799 = vmatpush1.msra.mxu0 %v768
    %800 = vmatprep.subr.mxu0 0.0
    %801 = vmatpush1.msra.mxu0 %v767
    %802 = vmatprep.subr.mxu0 0.0
    %803 = vmatpush1.msra.mxu0 %v766
    %804 = vmatprep.subr.mxu0 0.0
    %805 = vmatpush1.msra.mxu0 %v765
    %806 = vmatprep.subr.mxu0 0.0
    %807 = vmatpush1.msra.mxu0 %v764
    %808 = vmatprep.subr.mxu0 0.0
    %809 = vmatpush1.msra.mxu0 %v763
    %810 = vmatprep.subr.mxu0 0.0
    %811 = vmatpush1.msra.mxu0 %v762
    %812 = vmatprep.subr.mxu0 0.0
    %813 = vmatpush1.msra.mxu0 %v761
    %814 = vmatprep.subr.mxu0 0.0
    %815 = vmatpush2.msra.mxu0 0.0
    %816 = vmatprep.subr.mxu0 0.0
    %817 = vmatpush2.msra.mxu0 0.0
    %818 = vmatprep.subr.mxu0 0.0
    %819 = vmatpush2.msra.mxu0 0.0
    %820 = vmatprep.subr.mxu0 0.0
    %821 = vmatpush2.msra.mxu0 0.0
    %822 = vmatprep.subr.mxu0 0.0
    %823 = vmatpush2.msra.mxu0 0.0
    %824 = vmatprep.subr.mxu0 0.0
    %825 = vmatpush2.msra.mxu0 0.0
    %826 = vmatprep.subr.mxu0 0.0
    %827 = vmatpush2.msra.mxu0 0.0
    %828 = vmatprep.subr.mxu0 0.0
    %829 = vmatpush2.msra.mxu0 0.0
    %830 = vmatprep.subr.mxu0 0.0
    %831 = vmatpush2.msra.mxu0 0.0
    %832 = vmatprep.subr.mxu0 0.0
    %833 = vmatpush2.msra.mxu0 0.0
    %834 = vmatprep.subr.mxu0 0.0
    %835 = vmatpush2.msra.mxu0 0.0
    %836 = vmatprep.subr.mxu0 0.0
    %837 = vmatpush2.msra.mxu0 0.0
    %838 = vmatprep.subr.mxu0 0.0
    %839 = vmatpush2.msra.mxu0 0.0
    %840 = vmatprep.subr.mxu0 0.0
    %841 = vmatpush2.msra.mxu0 0.0
    %842 = vmatprep.subr.mxu0 0.0
    %843 = vmatpush2.msra.mxu0 0.0
    %844 = vmatprep.subr.mxu0 0.0
    %845 = vmatpush2.msra.mxu0 0.0
    %846 = vmatprep.mubr.f32.mxu0 0.0
    %847 = vmatmul.mubr.f32.gmra.mxu0 %v760
    %v848 = vpop.f32.mrf.mxu0
    %v849 = vadd.f32 %v781, %v848
    %v850 = vpop.f32.mrf.mxu0
    %851 = vdwg.mxu0
    %v852 = vmax.f32 %v849, 0.0
    %v853 = vld [vmem:[#allocation5 + $0x328] sm:$0xff]
    %v854 = vld [vmem:[#allocation5 + $0x330] sm:$0xff]
    %v855 = vld [vmem:[#allocation5 + $0x338] sm:$0xff]
    %v856 = vld [vmem:[#allocation5 + $0x340] sm:$0xff]
    %v857 = vld [vmem:[#allocation5 + $0x348] sm:$0xff]
    %v858 = vld [vmem:[#allocation5 + $0x350] sm:$0xff]
    %v859 = vld [vmem:[#allocation5 + $0x358] sm:$0xff]
    %v860 = vld [vmem:[#allocation5 + $0x360] sm:$0xff]
    %v861 = vld [vmem:[#allocation5 + $0x368] sm:$0xff]
    %v862 = vld [vmem:[#allocation5 + $0x370] sm:$0xff]
    %v863 = vld [vmem:[#allocation5 + $0x378] sm:$0xff]
    %v864 = vld [vmem:[#allocation5 + $0x380] sm:$0xff]
    %v865 = vld [vmem:[#allocation5 + $0x388] sm:$0xff]
    %v866 = vld [vmem:[#allocation5 + $0x390] sm:$0xff]
    %v867 = vld [vmem:[#allocation5 + $0x398] sm:$0xff]
    %v868 = vld [vmem:[#allocation5 + $0x3a0] sm:$0xff]
    %v869 = vld [vmem:[#allocation5 + $0x3a8] sm:$0x1]
    %v870 = vlaneseq
    %v871 = vshrl.u32 %v870, 7
    %v872 = vsub.s32 0, %v871
    %v873 = vrot.slane %v869, %v872
    %874 = vmatprep.subr.mxu0 0.0
    %875 = vmatpush1.msra.mxu0 %v868
    %876 = vmatprep.subr.mxu0 0.0
    %877 = vmatpush1.msra.mxu0 %v867
    %878 = vmatprep.subr.mxu0 0.0
    %879 = vmatpush1.msra.mxu0 %v866
    %880 = vmatprep.subr.mxu0 0.0
    %881 = vmatpush1.msra.mxu0 %v865
    %882 = vmatprep.subr.mxu0 0.0
    %883 = vmatpush1.msra.mxu0 %v864
    %884 = vmatprep.subr.mxu0 0.0
    %885 = vmatpush1.msra.mxu0 %v863
    %886 = vmatprep.subr.mxu0 0.0
    %887 = vmatpush1.msra.mxu0 %v862
    %888 = vmatprep.subr.mxu0 0.0
    %889 = vmatpush1.msra.mxu0 %v861
    %890 = vmatprep.subr.mxu0 0.0
    %891 = vmatpush1.msra.mxu0 %v860
    %892 = vmatprep.subr.mxu0 0.0
    %893 = vmatpush1.msra.mxu0 %v859
    %894 = vmatprep.subr.mxu0 0.0
    %895 = vmatpush1.msra.mxu0 %v858
    %896 = vmatprep.subr.mxu0 0.0
    %897 = vmatpush1.msra.mxu0 %v857
    %898 = vmatprep.subr.mxu0 0.0
    %899 = vmatpush1.msra.mxu0 %v856
    %900 = vmatprep.subr.mxu0 0.0
    %901 = vmatpush1.msra.mxu0 %v855
    %902 = vmatprep.subr.mxu0 0.0
    %903 = vmatpush1.msra.mxu0 %v854
    %904 = vmatprep.subr.mxu0 0.0
    %905 = vmatpush1.msra.mxu0 %v853
    %906 = vmatprep.subr.mxu0 0.0
    %907 = vmatpush2.msra.mxu0 0.0
    %908 = vmatprep.subr.mxu0 0.0
    %909 = vmatpush2.msra.mxu0 0.0
    %910 = vmatprep.subr.mxu0 0.0
    %911 = vmatpush2.msra.mxu0 0.0
    %912 = vmatprep.subr.mxu0 0.0
    %913 = vmatpush2.msra.mxu0 0.0
    %914 = vmatprep.subr.mxu0 0.0
    %915 = vmatpush2.msra.mxu0 0.0
    %916 = vmatprep.subr.mxu0 0.0
    %917 = vmatpush2.msra.mxu0 0.0
    %918 = vmatprep.subr.mxu0 0.0
    %919 = vmatpush2.msra.mxu0 0.0
    %920 = vmatprep.subr.mxu0 0.0
    %921 = vmatpush2.msra.mxu0 0.0
    %922 = vmatprep.subr.mxu0 0.0
    %923 = vmatpush2.msra.mxu0 0.0
    %924 = vmatprep.subr.mxu0 0.0
    %925 = vmatpush2.msra.mxu0 0.0
    %926 = vmatprep.subr.mxu0 0.0
    %927 = vmatpush2.msra.mxu0 0.0
    %928 = vmatprep.subr.mxu0 0.0
    %929 = vmatpush2.msra.mxu0 0.0
    %930 = vmatprep.subr.mxu0 0.0
    %931 = vmatpush2.msra.mxu0 0.0
    %932 = vmatprep.subr.mxu0 0.0
    %933 = vmatpush2.msra.mxu0 0.0
    %934 = vmatprep.subr.mxu0 0.0
    %935 = vmatpush2.msra.mxu0 0.0
    %936 = vmatprep.subr.mxu0 0.0
    %937 = vmatpush2.msra.mxu0 0.0
    %938 = vmatprep.mubr.f32.mxu0 0.0
    %939 = vmatmul.mubr.f32.gmra.mxu0 %v852
    %v940 = vpop.f32.mrf.mxu0
    %v941 = vadd.f32 %v873, %v940
    %v942 = vpop.f32.mrf.mxu0
    %943 = vdwg.mxu0
    %v944 = vxor.u32 %v941, 2147483648
    %v945 = vmul.f32 %v944, 1.442695
    %v946 = vpow.pop %v945
    %v947 = vadd.f32 %v946, 1.0
    %v948 = vrcp.pop %v947
    %v949 = vmul.f32 1.0, %v948
    %950 = vst [vmem:[#allocation7] sm:$0xff] %v949
    // Predicated region
    $region22: #{tpu_custom_call.1} parent=1 // pred_check
      _
    $region23: #{tpu_custom_call.1} parent=1 // pred_check_branch
      %952 = sbr.rel (0) target = $region25
    $region24: #{tpu_custom_call.1} parent=1 // pred_region
      %s954 = ssub.s32 128, 128
      %955 = vsyncadd [#allocation4], %s954
      %s957 = sshll.u32 [#allocation7], 4
      %s958 = int_to_ptr.vmem [resolvable:$true] %s957
      %960 = dma.vmem_to_hbm [thread:$0]  %s958, 128, %s3, [#allocation4]
    $region25: #{tpu_custom_call.1} parent=1 // pred_fallthru
      _
    // Predicated region
    $region26: #{tpu_custom_call.1} parent=1 // pred_check
      _
    $region27: #{tpu_custom_call.1} parent=1 // pred_check_branch
      %962 = sbr.rel (0) target = $region29
    $region28: #{tpu_custom_call.1} parent=1 // pred_region
      %963 = dma.done [#allocation4], 128
    $region29: #{tpu_custom_call.1} parent=1 // pred_fallthru
      _
    %964 = vsyncpa [#allocation3], 1
    %965 = vsyncpa [#allocation6], 1
    %966 = vsyncpa [#allocation4], 1

</llo_original>
